<compile_context>
chip_gen: v5e
topology: v5e:2x2
jax: 0.10.0
libtpu: 0.0.40
codegen_flags: <defaults>
</compile_context>

<pallas_src>
import math

import jax
import jax.numpy as jnp
from jax.experimental import pallas as pl
from jax.experimental.pallas import tpu as pltpu


# Tile caps: multiples of (8, 128), MXU-shaped, VMEM-safe on v5e/v6e/v7x.
_TM_MAX = 256
_TN_MAX = 256
_TK_MAX = 1024


def _poslinear_kernel(x_ref, w_ref, o_ref, acc_ref):
    k = pl.program_id(2)

    @pl.when(k == 0)
    def _init():
        acc_ref[...] = jnp.zeros_like(acc_ref)

    # |W| on the VPU (hides under MXU cycles), matmul on the MXU, f32 accum.
    acc_ref[...] += jnp.dot(
        x_ref[...],
        jnp.abs(w_ref[...]),
        preferred_element_type=jnp.float32,
    )

    @pl.when(k == pl.num_programs(2) - 1)
    def _finalize():
        o_ref[...] = acc_ref[...].astype(o_ref.dtype)


def pos_linear(x, weight):
    """y = x @ |weight|.  x: [..., in_dim], weight: [in_dim, out_dim]."""
    in_dim, out_dim = weight.shape
    assert x.shape[-1] == in_dim, "last dim of x must equal in_dim"
    lead_shape = x.shape[:-1]
    m = math.prod(lead_shape) if lead_shape else 1
    x2d = x.reshape(m, in_dim)
    out_dtype = jnp.result_type(x.dtype, weight.dtype)

    # ---- tile selection -----------------------------------------------------
    # M tile: full M if small (any M ok since it equals the full dim), else a
    # multiple-of-8 cap; Pallas masks the partial last block's output writes.
    tm = m if m <= _TM_MAX else _TM_MAX
    # N tile: full out_dim if small, else a 128-multiple cap (lane dense).
    tn = out_dim if out_dim <= _TN_MAX else _TN_MAX
    # K tile: full in_dim if small; otherwise cap and zero-pad K so partial
    # K blocks never feed garbage into the accumulator.
    if in_dim <= _TK_MAX:
        tk = in_dim
    else:
        tk = _TK_MAX
        k_pad = (-in_dim) % tk
        if k_pad:
            x2d = jnp.pad(x2d, ((0, 0), (0, k_pad)))
            weight = jnp.pad(weight, ((0, k_pad), (0, 0)))
    k_dim = x2d.shape[1]

    grid = (pl.cdiv(out_dim, tn), pl.cdiv(m, tm), k_dim // tk)

    cost = pl.CostEstimate(
        flops=2 * m * in_dim * out_dim,
        bytes_accessed=(
            m * in_dim * x2d.dtype.itemsize
            + in_dim * out_dim * weight.dtype.itemsize
            + m * out_dim * jnp.dtype(out_dtype).itemsize
        ),
        transcendentals=0,
    )

    out2d = pl.pallas_call(
        _poslinear_kernel,
        out_shape=jax.ShapeDtypeStruct((m, out_dim), out_dtype),
        grid=grid,
        in_specs=[
            # x: depends on (m, k) grid indices only.
            pl.BlockSpec((tm, tk), lambda n, i, k: (i, k)),
            # weight: independent of the M index -> stays VMEM-resident
            # across M tiles when a single (k, n) block covers it.
            pl.BlockSpec((tk, tn), lambda n, i, k: (k, n)),
        ],
        out_specs=pl.BlockSpec((tm, tn), lambda n, i, k: (i, n)),
        scratch_shapes=[pltpu.VMEM((tm, tn), jnp.float32)],
        compiler_params=pltpu.CompilerParams(
            # M and N tiles are independent -> megacore-shardable on v7x;
            # K is the accumulation axis.
            dimension_semantics=("parallel", "parallel", "arbitrary"),
            vmem_limit_bytes=32 * 1024 * 1024,
        ),
        cost_estimate=cost,
    )(x2d, weight)

    return out2d.reshape(*lead_shape, out_dim)


if __name__ == "__main__":
    # Deterministic synthetic parameters / inputs (no checkpoint load).
    key = jax.random.PRNGKey(0)
    kx, kw, kx2, kw2 = jax.random.split(key, 4)

    # 1) Module-sized shapes (in_dim=out_dim=32, batch=2, seq=8).
    in_dim, out_dim = 32, 32
    batch, seq = 2, 8
    x = jax.random.normal(kx, (batch, seq, in_dim), dtype=jnp.float32)
    weight = jax.random.normal(kw, (in_dim, out_dim), dtype=jnp.float32)

    y = pos_linear(x, weight)
    jax.block_until_ready(y)

    y_ref = jnp.matmul(x, jnp.abs(weight))
    assert y.shape == (batch, seq, out_dim)
    assert jnp.allclose(y, y_ref, atol=1e-5, rtol=1e-5)

    # 2) Larger shapes exercising the tiled grid (multiple M/N tiles with a
    #    partial final block in each).
    in_dim2, out_dim2 = 256, 384
    batch2, seq2 = 2, 320   # M = 640 -> 3 M tiles; N = 384 -> 2 N tiles
    x2 = jax.random.normal(kx2, (batch2, seq2, in_dim2), dtype=jnp.float32)
    w2 = jax.random.normal(kw2, (in_dim2, out_dim2), dtype=jnp.float32)

    y2 = pos_linear(x2, w2)
    jax.block_until_ready(y2)

    y2_ref = jnp.matmul(x2, jnp.abs(w2))
    assert y2.shape == (batch2, seq2, out_dim2)
    assert jnp.allclose(y2, y2_ref, atol=1e-3, rtol=1e-3)

    print("KERNEL_OK")
</pallas_src>

<mosaic_0001>
module attributes {stable_mosaic.version = 11 : i64} {
  func.func @_poslinear_kernel(%arg0: i32, %arg1: i32, %arg2: i32, %arg3: memref<16x32xf32, #tpu.memory_space<vmem>>, %arg4: memref<32x32xf32, #tpu.memory_space<vmem>>, %arg5: memref<16x32xf32, #tpu.memory_space<vmem>>, %arg6: memref<16x32xf32, #tpu.memory_space<vmem>>) attributes {dimension_semantics = [#tpu.dimension_semantics<parallel>, #tpu.dimension_semantics<parallel>, #tpu.dimension_semantics<arbitrary>], iteration_bounds = array<i64: 1, 1, 1>, scalar_prefetch = 0 : i64, scratch_operands = 1 : i64, tpu.core_type = #tpu.core_type<tc>, window_params = [{transform_indices = @transform_0, window_bounds = array<i64: 16, 32>}, {transform_indices = @transform_1, window_bounds = array<i64: 32, 32>}, {transform_indices = @transform_2, window_bounds = array<i64: 16, 32>}]} {
    %c0_i32 = arith.constant 0 : i32
    %0 = arith.cmpi eq, %arg2, %c0_i32 : i32
    %1 = arith.extui %0 : i1 to i32
    %c0_i32_0 = arith.constant 0 : i32
    %2 = arith.cmpi ne, %1, %c0_i32_0 : i32
    scf.if %2 {
      %cst_10 = arith.constant 0.000000e+00 : f32
      %13 = vector.broadcast %cst_10 : f32 to vector<16x32xf32>
      %c0_11 = arith.constant 0 : index
      %c0_12 = arith.constant 0 : index
      %14 = vector.load %arg6[%c0_11, %c0_12] : memref<16x32xf32, #tpu.memory_space<vmem>>, vector<16x32xf32>
      tpu.vector_store %arg6[%c0_11, %c0_12], %13 {strides = array<i32>} : memref<16x32xf32, #tpu.memory_space<vmem>>, vector<16x32xf32>,
    } else {
    }
    %c0 = arith.constant 0 : index
    %c0_1 = arith.constant 0 : index
    %3 = vector.load %arg6[%c0, %c0_1] : memref<16x32xf32, #tpu.memory_space<vmem>>, vector<16x32xf32>
    %c0_2 = arith.constant 0 : index
    %c0_3 = arith.constant 0 : index
    %4 = vector.load %arg3[%c0_2, %c0_3] : memref<16x32xf32, #tpu.memory_space<vmem>>, vector<16x32xf32>
    %c0_4 = arith.constant 0 : index
    %c0_5 = arith.constant 0 : index
    %5 = vector.load %arg4[%c0_4, %c0_5] : memref<32x32xf32, #tpu.memory_space<vmem>>, vector<32x32xf32>
    %6 = math.absf %5 : vector<32x32xf32>
    %cst = arith.constant dense<0.000000e+00> : vector<16x32xf32>
    %7 = tpu.matmul %4, %6, %cst {dimension_numbers = #tpu.dot_dimension_numbers<[1], [0], [0], [1], [0, 0, 1, 1], [], []>} : vector<16x32xf32>, vector<32x32xf32>, vector<16x32xf32> -> vector<16x32xf32>
    %8 = arith.addf %3, %7 : vector<16x32xf32>
    %c0_6 = arith.constant 0 : index
    %c0_7 = arith.constant 0 : index
    %9 = vector.load %arg6[%c0_6, %c0_7] : memref<16x32xf32, #tpu.memory_space<vmem>>, vector<16x32xf32>
    tpu.vector_store %arg6[%c0_6, %c0_7], %8 {strides = array<i32>} : memref<16x32xf32, #tpu.memory_space<vmem>>, vector<16x32xf32>,
    %c0_i32_8 = arith.constant 0 : i32
    %10 = arith.cmpi eq, %arg2, %c0_i32_8 : i32
    %11 = arith.extui %10 : i1 to i32
    %c0_i32_9 = arith.constant 0 : i32
    %12 = arith.cmpi ne, %11, %c0_i32_9 : i32
    scf.if %12 {
      %c0_10 = arith.constant 0 : index
      %c0_11 = arith.constant 0 : index
      %13 = vector.load %arg6[%c0_10, %c0_11] : memref<16x32xf32, #tpu.memory_space<vmem>>, vector<16x32xf32>
      %c0_12 = arith.constant 0 : index
      %c0_13 = arith.constant 0 : index
      %14 = vector.load %arg5[%c0_12, %c0_13] : memref<16x32xf32, #tpu.memory_space<vmem>>, vector<16x32xf32>
      tpu.vector_store %arg5[%c0_12, %c0_13], %13 {strides = array<i32>} : memref<16x32xf32, #tpu.memory_space<vmem>>, vector<16x32xf32>,
    } else {
    }
    return
  }
  func.func @transform_0(%arg0: i32, %arg1: i32, %arg2: i32) -> (i32, i32) {
    %c0_i32 = arith.constant 0 : i32
    return %arg1, %arg2 : i32, i32
  }
  func.func @transform_1(%arg0: i32, %arg1: i32, %arg2: i32) -> (i32, i32) {
    %c0_i32 = arith.constant 0 : i32
    return %arg2, %arg0 : i32, i32
  }
  func.func @transform_2(%arg0: i32, %arg1: i32, %arg2: i32) -> (i32, i32) {
    %c0_i32 = arith.constant 0 : i32
    return %arg1, %arg0 : i32, i32
  }
}

</mosaic_0001>

<llo_original>
// kernel: tpu_custom_call.1
$region0: #{tpu_custom_call.1}
  #allocation0 [shape = 'u32[]', space=smem, size = 0x4, offset = 0x4, fixed_abs, tag = 'smem constant byte address 0x4 - core index']
  #allocation1 [shape = 'u32[72,128]{1,0:T(1,128)}', space=vmem, size = 0x9000, scoped, tag = 'internal scratch']
  #allocation2 [shape = 'f32[16,32]{1,0:T(8,128)}', space=vmem, size = 0x2000, scoped, tag = 'scratch operand']
  %s0 = inlined_call_operand.hbm [shape: f32[16,32], index: 0, kind: input, shape index: {}]
  %s1 = inlined_call_operand.hbm [shape: f32[32,32], index: 1, kind: input, shape index: {}]
  %s2 = inlined_call_operand.hbm [shape: f32[16,32], index: 2, kind: output, shape index: {}]
  %s3 = sld [smem:[#allocation0]]
  $region34: #{tpu_custom_call.1} parent=0
    _
  %s5 = ssub.s32 1, %s3
  %s6 = scalar_select 0, %s5, %s3
  $region1: #{tpu_custom_call.1} parent=0
    #allocation3 [shape = 'u8[8192]{0}', space=vmem, size = 0x2000, scoped, tag = 'input window, operand 0, single buffered']
    #allocation4 [shape = 's32[1]{0}', space=sflag, size = 0x4, scoped, tag = 'scoped memory for tpu_custom_call.1']
    #allocation5 [shape = 's32[1]{0}', space=sflag, size = 0x4, scoped, tag = 'scoped memory for tpu_custom_call.1']
    #allocation6 [shape = 'u8[16384]{0}', space=vmem, size = 0x4000, scoped, tag = 'input window, operand 1, single buffered']
    #allocation7 [shape = 's32[1]{0}', space=sflag, size = 0x4, scoped, tag = 'scoped memory for tpu_custom_call.1']
    #allocation8 [shape = 'u8[8192]{0}', space=vmem, size = 0x2000, scoped, tag = 'output window, operand 0, single buffered']
    %7 = vsyncpa [#allocation4], 0
    %8 = vsyncpa [#allocation7], 0
    %9 = vsyncpa [#allocation5], 0
    // Predicated region
    $region2: #{tpu_custom_call.1} parent=1 // pred_check
      _
    $region3: #{tpu_custom_call.1} parent=1 // pred_check_branch
      %11 = sbr.rel (0) target = $region5
    $region4: #{tpu_custom_call.1} parent=1 // pred_region
      %13 = vsyncadd [#allocation4], 0
      %s14 = sshll.u32 %s0, 4
      %s15 = int_to_ptr.hbm [resolvable:$true] %s14
      %s16 = sshll.u32 [#allocation3], 4
      %s17 = int_to_ptr.vmem [resolvable:$true] %s16
      %22 = dma.hbm_to_vmem [thread:$0]  %s15, 256, %s17, [#allocation4], 128, 128, 8
    $region5: #{tpu_custom_call.1} parent=1 // pred_fallthru
      _
    // Predicated region
    $region6: #{tpu_custom_call.1} parent=1 // pred_check
      _
    $region7: #{tpu_custom_call.1} parent=1 // pred_check_branch
      %24 = sbr.rel (0) target = $region9
    $region8: #{tpu_custom_call.1} parent=1 // pred_region
      %26 = vsyncadd [#allocation7], 0
      %s27 = sshll.u32 %s1, 4
      %s28 = int_to_ptr.hbm [resolvable:$true] %s27
      %s29 = sshll.u32 [#allocation6], 4
      %s30 = int_to_ptr.vmem [resolvable:$true] %s29
      %35 = dma.hbm_to_vmem [thread:$0]  %s28, 512, %s30, [#allocation7], 128, 128, 8
    $region9: #{tpu_custom_call.1} parent=1 // pred_fallthru
      _
    // Predicated region
    $region10: #{tpu_custom_call.1} parent=1 // pred_check
      _
    $region11: #{tpu_custom_call.1} parent=1 // pred_check_branch
      %37 = sbr.rel (0) target = $region13
    $region12: #{tpu_custom_call.1} parent=1 // pred_region
      %39 = dma.done [#allocation4], 256
    $region13: #{tpu_custom_call.1} parent=1 // pred_fallthru
      _
    // Predicated region
    $region14: #{tpu_custom_call.1} parent=1 // pred_check
      _
    $region15: #{tpu_custom_call.1} parent=1 // pred_check_branch
      %41 = sbr.rel (0) target = $region17
    $region16: #{tpu_custom_call.1} parent=1 // pred_region
      %43 = dma.done [#allocation7], 512
    $region17: #{tpu_custom_call.1} parent=1 // pred_fallthru
      _
    %p44 = scmp.eq.s32.totalorder 0, 0
    // Predicated region
    $region18: #{tpu_custom_call.1} parent=1 // pred_check
      %p45 = pneg %p44
    $region19: #{tpu_custom_call.1} parent=1 // pred_check_branch
      %47 = sbr.rel (%p45) target = $region21
    $region20: #{tpu_custom_call.1} parent=1 // pred_region
      %vm48 = vcmask 261120
      %49 = vst.msk [vmem:[#allocation2] sm:$0xff] %vm48, 0.0
      %50 = vst.msk [vmem:[#allocation2 + $0x8] sm:$0xff] %vm48, 0.0
    $region21: #{tpu_custom_call.1} parent=1 // pred_fallthru
      _
    %v51 = vld [vmem:[#allocation2] sm:$0xff]
    %v52 = vld [vmem:[#allocation2 + $0x8] sm:$0xff]
    %v53 = vld [vmem:[#allocation3] sm:$0xff]
    %v54 = vld [vmem:[#allocation3 + $0x8] sm:$0xff]
    %v55 = vld [vmem:[#allocation6] sm:$0xff]
    %v56 = vld [vmem:[#allocation6 + $0x8] sm:$0xff]
    %v57 = vld [vmem:[#allocation6 + $0x10] sm:$0xff]
    %v58 = vld [vmem:[#allocation6 + $0x18] sm:$0xff]
    %v59 = vand.u32 2147483647, %v55
    %v60 = vand.u32 2147483647, %v56
    %v61 = vand.u32 2147483647, %v57
    %v62 = vand.u32 2147483647, %v58
    %vm63 = vcmask 261120
    %v65 = vsel %vm63, %v53, 0
    %v68 = vsel %vm63, %v54, 0
    %70 = vmatpush.msra.mxu0 0.0
    %71 = vmatpush.msra.mxu0 0.0
    %72 = vmatpush.msra.mxu0 0.0
    %73 = vmatpush.msra.mxu0 0.0
    %74 = vmatpush.msra.mxu0 0.0
    %75 = vmatpush.msra.mxu0 0.0
    %76 = vmatpush.msra.mxu0 0.0
    %77 = vmatpush.msra.mxu0 0.0
    %78 = vmatpush.msra.mxu0 0.0
    %79 = vmatpush.msra.mxu0 0.0
    %80 = vmatpush.msra.mxu0 0.0
    %81 = vmatpush.msra.mxu0 0.0
    %82 = vmatpush.msra.mxu0 %v62
    %83 = vmatpush.msra.mxu0 %v61
    %84 = vmatpush.msra.mxu0 %v60
    %85 = vmatpush.msra.mxu0 %v59
    %86 = vmatmul.f32.gmra.mxu0 %v65
    %v87 = vpop.f32.mrf.mxu0
    %v88 = vadd.f32 0.0, %v87
    %89 = vmatmul.f32.gmra.mxu0 %v68
    %v90 = vpop.f32.mrf.mxu0
    %v91 = vadd.f32 0.0, %v90
    %92 = vdwg.mxu0
    %v93 = vadd.f32 %v51, %v88
    %v94 = vadd.f32 %v52, %v91
    %95 = vst.msk [vmem:[#allocation2] sm:$0xff] %vm63, %v93
    %96 = vst.msk [vmem:[#allocation2 + $0x8] sm:$0xff] %vm63, %v94
    // Predicated region
    $region22: #{tpu_custom_call.1} parent=1 // pred_check
      %p97 = pneg %p44
    $region23: #{tpu_custom_call.1} parent=1 // pred_check_branch
      %99 = sbr.rel (%p97) target = $region25
    $region24: #{tpu_custom_call.1} parent=1 // pred_region
      %v100 = vld [vmem:[#allocation2] sm:$0xff]
      %v101 = vld [vmem:[#allocation2 + $0x8] sm:$0xff]
      %102 = vst.msk [vmem:[#allocation8] sm:$0xff] %vm63, %v100
      %103 = vst.msk [vmem:[#allocation8 + $0x8] sm:$0xff] %vm63, %v101
    $region25: #{tpu_custom_call.1} parent=1 // pred_fallthru
      _
    // Predicated region
    $region26: #{tpu_custom_call.1} parent=1 // pred_check
      _
    $region27: #{tpu_custom_call.1} parent=1 // pred_check_branch
      %105 = sbr.rel (0) target = $region29
    $region28: #{tpu_custom_call.1} parent=1 // pred_region
      %107 = vsyncadd [#allocation5], 0
      %s108 = sshll.u32 [#allocation8], 4
      %s109 = int_to_ptr.vmem [resolvable:$true] %s108
      %s110 = sshll.u32 %s2, 4
      %s111 = int_to_ptr.hbm [resolvable:$true] %s110
      %116 = dma.vmem_to_hbm [thread:$0]  %s109, 256, %s111, [#allocation5], 128, 128, 8
    $region29: #{tpu_custom_call.1} parent=1 // pred_fallthru
      _
    // Predicated region
    $region30: #{tpu_custom_call.1} parent=1 // pred_check
      _
    $region31: #{tpu_custom_call.1} parent=1 // pred_check_branch
      %118 = sbr.rel (0) target = $region33
    $region32: #{tpu_custom_call.1} parent=1 // pred_region
      %120 = dma.done [#allocation5], 256
    $region33: #{tpu_custom_call.1} parent=1 // pred_fallthru
      _
    %121 = vsyncpa [#allocation4], 1
    %122 = vsyncpa [#allocation7], 1
    %123 = vsyncpa [#allocation5], 1

</llo_original>
